<compile_context>
chip_gen: v7x
topology: tpu7x:2x2x1
jax: 0.10.0
libtpu: 0.0.40
codegen_flags: <defaults>
</compile_context>

<pallas_src>
import functools

import jax
import jax.numpy as jnp
from jax import lax
from jax.experimental import pallas as pl
from jax.experimental.pallas import tpu as pltpu


def _round_up(x, m):
    return ((x + m - 1) // m) * m


def _vmem_capacity_bytes():
    """Generation-aware VMEM capacity (64 MiB on v7x, 128 MiB on v5e/v6e)."""
    try:
        info = pltpu.get_tpu_info()
        cap = getattr(info, "vmem_capacity_bytes", None)
        if cap:
            return int(cap)
    except Exception:
        pass
    return 128 << 20  # conservative fallback (v5e/v6e)


def _generator_kernel(x_ref, w_ref, b_ref, o_ref, m_sc, s_sc, *,
                      num_vocab_tiles):
    # x_ref : (tm, d_model)   native dtype -> MXU operand
    # w_ref : (d_model, tn)   native dtype -> MXU operand
    # b_ref : (1, tn)
    # o_ref : (tm, vocab_p)   resident across the vocab grid axis; raw logits
    #                         are stashed here tile-by-tile, normalized at end.
    # m_sc, s_sc : (tm, 128)  per-lane online-LSE running max / running sum.
    j = pl.program_id(1)
    tn = w_ref.shape[1]
    nchunks = tn // 128

    @pl.when(j == 0)
    def _init():
        m_sc[...] = jnp.full(m_sc.shape, -jnp.inf, dtype=m_sc.dtype)
        s_sc[...] = jnp.zeros(s_sc.shape, dtype=s_sc.dtype)

    # Matmul in native operand dtype; f32 accumulation on the MXU.
    logits = jnp.dot(x_ref[...], w_ref[...],
                     preferred_element_type=jnp.float32)
    logits = logits + b_ref[...].astype(jnp.float32)

    # Stash this tile's raw logits directly into the resident output block
    # (lane-aligned dynamic slice).  For bf16 outputs this rounds the logits
    # to out-dtype precision before the lse subtraction (acceptable).
    col0 = pl.multiple_of(j * tn, 128)
    o_ref[:, pl.ds(col0, tn)] = logits.astype(o_ref.dtype)

    # Per-lane online LSE update: only VPU elementwise max/add + EUP exp per
    # tile; no cross-lane (XLU) reductions until the finalize.
    m_prev = m_sc[...]
    tile_m = logits[:, 0:128]
    for k in range(1, nchunks):
        tile_m = jnp.maximum(tile_m, logits[:, k * 128:(k + 1) * 128])
    m_new = jnp.maximum(m_prev, tile_m)
    s_new = s_sc[...] * jnp.exp(m_prev - m_new)
    for k in range(nchunks):
        s_new = s_new + jnp.exp(logits[:, k * 128:(k + 1) * 128] - m_new)
    m_sc[...] = m_new
    s_sc[...] = s_new

    @pl.when(j == num_vocab_tiles - 1)
    def _finalize():
        # Single cross-lane reduction per row tile.
        m = m_sc[...]
        row_max = jnp.max(m, axis=-1, keepdims=True)                 # (tm, 1)
        row_sum = jnp.sum(s_sc[...] * jnp.exp(m - row_max),
                          axis=-1, keepdims=True)                    # (tm, 1)
        lse = row_max + jnp.log(row_sum)                             # (tm, 1)

        if num_vocab_tiles <= 8:
            # Small nj: static, lane-dense, statically-indexed stores.
            for t in range(num_vocab_tiles):
                blk = o_ref[:, t * tn:(t + 1) * tn].astype(jnp.float32)
                o_ref[:, t * tn:(t + 1) * tn] = (blk - lse).astype(o_ref.dtype)
        else:
            # Large nj: dynamic loop keeps code size and live ranges bounded.
            def body(t, carry):
                start = pl.multiple_of(t * tn, 128)
                blk = o_ref[:, pl.ds(start, tn)].astype(jnp.float32)
                o_ref[:, pl.ds(start, tn)] = (blk - lse).astype(o_ref.dtype)
                return carry

            lax.fori_loop(0, num_vocab_tiles, body, 0)


@functools.partial(jax.jit, static_argnames=("tm", "tn"))
def generator_forward(x, weight, bias, *, tm=512, tn=None):
    """log_softmax(x @ weight + bias, axis=-1).

    x: [B, S, d_model]; weight: [d_model, vocab]; bias: [vocab].
    """
    batch, seq, d_model = x.shape
    vocab = weight.shape[1]
    rows = batch * seq

    out_dtype = x.dtype
    itx = jnp.dtype(x.dtype).itemsize
    itw = jnp.dtype(weight.dtype).itemsize
    itb = jnp.dtype(bias.dtype).itemsize
    ito = jnp.dtype(out_dtype).itemsize

    # Generation-aware VMEM budget (~56 MiB on v7x, ~108 MiB on v5e/v6e).
    budget = int(0.85 * _vmem_capacity_bytes())

    # Vocab tile: lane-dense multiple of 128.  Wider tiles (fewer grid steps /
    # LSE updates) only when the budget is v5e/v6e-sized.
    if tn is None:
        tn = 1024 if (budget >= (96 << 20) and vocab >= 4096) else 512
    tn_eff = _round_up(min(tn, _round_up(vocab, 128)), 128)
    vocab_p = _round_up(vocab, tn_eff)
    nj = vocab_p // tn_eff

    # Row tile: multiple of 16 sublanes (covers bf16 packing), shrink for tiny
    # inputs, and ensure >= 2 row tiles when splittable so the "parallel" axis
    # shards across both TensorCores on v7x.
    tm_eff = _round_up(min(tm, _round_up(rows, 16)), 16)
    if rows > 16:
        tm_eff = min(tm_eff, _round_up((rows + 1) // 2, 16))

    def _vmem_needed(tm_):
        return (2 * tm_ * vocab_p * ito        # resident output block (x2 for pipelining)
                + 2 * tm_ * d_model * itx      # x tiles (double-buffered)
                + 2 * d_model * tn_eff * itw   # weight tiles (double-buffered)
                + 2 * 8 * tn_eff * itb         # bias tiles (sublane padded)
                + 2 * tm_ * 128 * 4            # m/s per-lane scratches
                + (2 << 20))                   # headroom for compiler temporaries

    # Auto-derive tm from the VMEM budget (keeps the kernel portable to v7x).
    while _vmem_needed(tm_eff) > budget and tm_eff > 16:
        tm_eff = max(16, _round_up(tm_eff // 2, 16))

    rows_p = _round_up(rows, tm_eff)
    ni = rows_p // tm_eff

    x2d = x.reshape(rows, d_model)
    if rows_p != rows:
        x2d = jnp.pad(x2d, ((0, rows_p - rows), (0, 0)))
    w_p, b_p = weight, bias
    if vocab_p != vocab:
        w_p = jnp.pad(weight, ((0, 0), (0, vocab_p - vocab)))
        # Padded vocab columns get a hugely negative bias so they vanish in the LSE.
        b_p = jnp.pad(bias, (0, vocab_p - vocab), constant_values=-1e30)
    b2d = b_p.reshape(1, vocab_p)

    vmem_limit = min(max(int(1.2 * _vmem_needed(tm_eff)), 16 << 20), budget)

    cost = pl.CostEstimate(
        flops=2 * rows_p * d_model * vocab_p,
        transcendentals=rows_p * vocab_p,
        bytes_accessed=(rows_p * d_model * itx
                        + ni * d_model * vocab_p * itw   # weight re-streamed per row tile
                        + ni * vocab_p * itb
                        + rows_p * vocab_p * ito),
    )

    kernel = functools.partial(_generator_kernel, num_vocab_tiles=nj)

    out = pl.pallas_call(
        kernel,
        out_shape=jax.ShapeDtypeStruct((rows_p, vocab_p), out_dtype),
        grid_spec=pltpu.PrefetchScalarGridSpec(
            num_scalar_prefetch=0,
            grid=(ni, nj),
            in_specs=[
                pl.BlockSpec((tm_eff, d_model), lambda i, j: (i, 0)),
                pl.BlockSpec((d_model, tn_eff), lambda i, j: (0, j)),
                pl.BlockSpec((1, tn_eff), lambda i, j: (0, j)),
            ],
            out_specs=pl.BlockSpec((tm_eff, vocab_p), lambda i, j: (i, 0)),
            scratch_shapes=[
                pltpu.VMEM((tm_eff, 128), jnp.float32),   # per-lane running max
                pltpu.VMEM((tm_eff, 128), jnp.float32),   # per-lane running sum
            ],
        ),
        compiler_params=pltpu.CompilerParams(
            dimension_semantics=("parallel", "arbitrary"),
            vmem_limit_bytes=vmem_limit,
        ),
        cost_estimate=cost,
    )(x2d, w_p, b2d)

    return out[:rows, :vocab].reshape(batch, seq, vocab)


if __name__ == "__main__":
    key = jax.random.PRNGKey(0)

    # ---- Test 1: shapes consistent with the module (d_model=32, vocab=128) ----
    batch, seq, d_model, vocab = 2, 8, 32, 128
    kx, kw, kb, k2, k3 = jax.random.split(key, 5)
    bound = 1.0 / jnp.sqrt(jnp.float32(d_model))
    weight = jax.random.uniform(kw, (d_model, vocab), jnp.float32, -bound, bound)
    bias = jax.random.uniform(kb, (vocab,), jnp.float32, -bound, bound)
    x = jax.random.normal(kx, (batch, seq, d_model), jnp.float32)

    out = generator_forward(x, weight, bias)
    jax.block_until_ready(out)
    ref = jax.nn.log_softmax(x @ weight + bias, axis=-1)
    assert out.shape == (batch, seq, vocab)
    assert jnp.allclose(out, ref, atol=1e-5, rtol=1e-5)

    # ---- Test 2: unaligned rows/vocab exercises padding + multi-tile LSE ----
    b2_, s2_, v2_ = 2, 7, 320
    kx2, kw2, kb2 = jax.random.split(k2, 3)
    w2 = jax.random.uniform(kw2, (d_model, v2_), jnp.float32, -bound, bound)
    bb2 = jax.random.uniform(kb2, (v2_,), jnp.float32, -bound, bound)
    x2 = jax.random.normal(kx2, (b2_, s2_, d_model), jnp.float32)

    out2 = generator_forward(x2, w2, bb2, tn=128)  # forces 3 vocab tiles
    jax.block_until_ready(out2)
    ref2 = jax.nn.log_softmax(x2 @ w2 + bb2, axis=-1)
    assert out2.shape == (b2_, s2_, v2_)
    assert jnp.allclose(out2, ref2, atol=1e-5, rtol=1e-5)

    # ---- Test 3: many vocab tiles exercises the dynamic-loop finalize path ----
    v3_ = 1200
    kx3, kw3, kb3 = jax.random.split(k3, 3)
    w3 = jax.random.uniform(kw3, (d_model, v3_), jnp.float32, -bound, bound)
    bb3 = jax.random.uniform(kb3, (v3_,), jnp.float32, -bound, bound)
    x3 = jax.random.normal(kx3, (batch, seq, d_model), jnp.float32)

    out3 = generator_forward(x3, w3, bb3, tn=128)  # 10 vocab tiles -> fori finalize
    jax.block_until_ready(out3)
    ref3 = jax.nn.log_softmax(x3 @ w3 + bb3, axis=-1)
    assert out3.shape == (batch, seq, v3_)
    assert jnp.allclose(out3, ref3, atol=2e-5, rtol=1e-5)

    print("KERNEL_OK")
</pallas_src>

<mosaic_0001>
module attributes {stable_mosaic.version = 11 : i64} {
  func.func @_generator_kernel(%arg0: i32, %arg1: i32, %arg2: memref<16x32xf32, #tpu.memory_space<vmem>>, %arg3: memref<32x128xf32, #tpu.memory_space<vmem>>, %arg4: memref<1x128xf32, #tpu.memory_space<vmem>>, %arg5: memref<16x128xf32, #tpu.memory_space<vmem>>, %arg6: memref<16x128xf32, #tpu.memory_space<vmem>>, %arg7: memref<16x128xf32, #tpu.memory_space<vmem>>) attributes {dimension_semantics = [#tpu.dimension_semantics<parallel>, #tpu.dimension_semantics<arbitrary>], iteration_bounds = array<i64: 1, 1>, scalar_prefetch = 0 : i64, scratch_operands = 2 : i64, tpu.core_type = #tpu.core_type<tc>, window_params = [{transform_indices = @transform_0, window_bounds = array<i64: 16, 32>}, {transform_indices = @transform_1, window_bounds = array<i64: 32, 128>}, {transform_indices = @transform_2, window_bounds = array<i64: 1, 128>}, {transform_indices = @transform_3, window_bounds = array<i64: 16, 128>}]} {
    %c0_i32 = arith.constant 0 : i32
    %0 = arith.cmpi eq, %arg1, %c0_i32 : i32
    %1 = arith.extui %0 : i1 to i32
    %c0_i32_0 = arith.constant 0 : i32
    %2 = arith.cmpi ne, %1, %c0_i32_0 : i32
    scf.if %2 {
      %cst_17 = arith.constant 0xFF800000 : f32
      %27 = vector.broadcast %cst_17 : f32 to vector<16x128xf32>
      %c0_18 = arith.constant 0 : index
      %c0_19 = arith.constant 0 : index
      %28 = vector.load %arg6[%c0_18, %c0_19] : memref<16x128xf32, #tpu.memory_space<vmem>>, vector<16x128xf32>
      tpu.vector_store %arg6[%c0_18, %c0_19], %27 {strides = array<i32>} : memref<16x128xf32, #tpu.memory_space<vmem>>, vector<16x128xf32>,
      %cst_20 = arith.constant 0.000000e+00 : f32
      %29 = vector.broadcast %cst_20 : f32 to vector<16x128xf32>
      %c0_21 = arith.constant 0 : index
      %c0_22 = arith.constant 0 : index
      %30 = vector.load %arg7[%c0_21, %c0_22] : memref<16x128xf32, #tpu.memory_space<vmem>>, vector<16x128xf32>
      tpu.vector_store %arg7[%c0_21, %c0_22], %29 {strides = array<i32>} : memref<16x128xf32, #tpu.memory_space<vmem>>, vector<16x128xf32>,
    } else {
    }
    %c0 = arith.constant 0 : index
    %c0_1 = arith.constant 0 : index
    %3 = vector.load %arg2[%c0, %c0_1] : memref<16x32xf32, #tpu.memory_space<vmem>>, vector<16x32xf32>
    %c0_2 = arith.constant 0 : index
    %c0_3 = arith.constant 0 : index
    %4 = vector.load %arg3[%c0_2, %c0_3] : memref<32x128xf32, #tpu.memory_space<vmem>>, vector<32x128xf32>
    %cst = arith.constant dense<0.000000e+00> : vector<16x128xf32>
    %5 = tpu.matmul %3, %4, %cst {dimension_numbers = #tpu.dot_dimension_numbers<[1], [0], [0], [1], [0, 0, 1, 1], [], []>} : vector<16x32xf32>, vector<32x128xf32>, vector<16x128xf32> -> vector<16x128xf32>
    %c0_4 = arith.constant 0 : index
    %c0_5 = arith.constant 0 : index
    %6 = vector.load %arg4[%c0_4, %c0_5] : memref<1x128xf32, #tpu.memory_space<vmem>>, vector<1x128xf32>
    %7 = vector.broadcast %6 : vector<1x128xf32> to vector<16x128xf32>
    %8 = arith.addf %5, %7 : vector<16x128xf32>
    %c128_i32 = arith.constant 128 : i32
    %9 = arith.muli %arg1, %c128_i32 : i32
    %10 = tpu.assume_multiple %9, 128 : i32
    %c0_6 = arith.constant 0 : index
    %11 = arith.index_cast %10 : i32 to index
    %12 = vector.load %arg5[%c0_6, %11] : memref<16x128xf32, #tpu.memory_space<vmem>>, vector<16x128xf32>
    tpu.vector_store %arg5[%c0_6, %11], %8 {strides = array<i32>} : memref<16x128xf32, #tpu.memory_space<vmem>>, vector<16x128xf32>,
    %c0_7 = arith.constant 0 : index
    %c0_8 = arith.constant 0 : index
    %13 = vector.load %arg6[%c0_7, %c0_8] : memref<16x128xf32, #tpu.memory_space<vmem>>, vector<16x128xf32>
    %14 = arith.maximumf %13, %8 : vector<16x128xf32>
    %c0_9 = arith.constant 0 : index
    %c0_10 = arith.constant 0 : index
    %15 = vector.load %arg7[%c0_9, %c0_10] : memref<16x128xf32, #tpu.memory_space<vmem>>, vector<16x128xf32>
    %16 = arith.subf %13, %14 : vector<16x128xf32>
    %17 = math.exp %16 : vector<16x128xf32>
    %18 = arith.mulf %15, %17 : vector<16x128xf32>
    %19 = arith.subf %8, %14 : vector<16x128xf32>
    %20 = math.exp %19 : vector<16x128xf32>
    %21 = arith.addf %18, %20 : vector<16x128xf32>
    %c0_11 = arith.constant 0 : index
    %c0_12 = arith.constant 0 : index
    %22 = vector.load %arg6[%c0_11, %c0_12] : memref<16x128xf32, #tpu.memory_space<vmem>>, vector<16x128xf32>
    tpu.vector_store %arg6[%c0_11, %c0_12], %14 {strides = array<i32>} : memref<16x128xf32, #tpu.memory_space<vmem>>, vector<16x128xf32>,
    %c0_13 = arith.constant 0 : index
    %c0_14 = arith.constant 0 : index
    %23 = vector.load %arg7[%c0_13, %c0_14] : memref<16x128xf32, #tpu.memory_space<vmem>>, vector<16x128xf32>
    tpu.vector_store %arg7[%c0_13, %c0_14], %21 {strides = array<i32>} : memref<16x128xf32, #tpu.memory_space<vmem>>, vector<16x128xf32>,
    %c0_i32_15 = arith.constant 0 : i32
    %24 = arith.cmpi eq, %arg1, %c0_i32_15 : i32
    %25 = arith.extui %24 : i1 to i32
    %c0_i32_16 = arith.constant 0 : i32
    %26 = arith.cmpi ne, %25, %c0_i32_16 : i32
    scf.if %26 {
      %c0_17 = arith.constant 0 : index
      %c0_18 = arith.constant 0 : index
      %27 = vector.load %arg6[%c0_17, %c0_18] : memref<16x128xf32, #tpu.memory_space<vmem>>, vector<16x128xf32>
      %cst_19 = arith.constant dense<0xFF800000> : vector<16xf32>
      %28 = vector.multi_reduction <maximumf>, %27, %cst_19 [1] : vector<16x128xf32> to vector<16xf32>
      %29 = vector.shape_cast %28 : vector<16xf32> to vector<16x1xf32>
      %c0_20 = arith.constant 0 : index
      %c0_21 = arith.constant 0 : index
      %30 = vector.load %arg7[%c0_20, %c0_21] : memref<16x128xf32, #tpu.memory_space<vmem>>, vector<16x128xf32>
      %31 = vector.broadcast %29 : vector<16x1xf32> to vector<16x128xf32>
      %32 = arith.subf %27, %31 : vector<16x128xf32>
      %33 = math.exp %32 : vector<16x128xf32>
      %34 = arith.mulf %30, %33 : vector<16x128xf32>
      %cst_22 = arith.constant dense<0.000000e+00> : vector<16xf32>
      %35 = vector.multi_reduction <add>, %34, %cst_22 [1] : vector<16x128xf32> to vector<16xf32>
      %36 = vector.shape_cast %35 : vector<16xf32> to vector<16x1xf32>
      %37 = math.log %36 : vector<16x1xf32>
      %38 = arith.addf %29, %37 : vector<16x1xf32>
      %c0_23 = arith.constant 0 : index
      %c0_24 = arith.constant 0 : index
      %39 = vector.load %arg5[%c0_23, %c0_24] : memref<16x128xf32, #tpu.memory_space<vmem>>, vector<16x128xf32>
      %40 = vector.broadcast %38 : vector<16x1xf32> to vector<16x128xf32>
      %41 = arith.subf %39, %40 : vector<16x128xf32>
      %c0_25 = arith.constant 0 : index
      %c0_26 = arith.constant 0 : index
      %42 = vector.load %arg5[%c0_25, %c0_26] : memref<16x128xf32, #tpu.memory_space<vmem>>, vector<16x128xf32>
      tpu.vector_store %arg5[%c0_25, %c0_26], %41 {strides = array<i32>} : memref<16x128xf32, #tpu.memory_space<vmem>>, vector<16x128xf32>,
    } else {
    }
    return
  }
  func.func @transform_0(%arg0: i32, %arg1: i32) -> (i32, i32) {
    %c0_i32 = arith.constant 0 : i32
    %c0_i32_0 = arith.constant 0 : i32
    return %arg0, %c0_i32 : i32, i32
  }
  func.func @transform_1(%arg0: i32, %arg1: i32) -> (i32, i32) {
    %c0_i32 = arith.constant 0 : i32
    %c0_i32_0 = arith.constant 0 : i32
    return %c0_i32, %arg1 : i32, i32
  }
  func.func @transform_2(%arg0: i32, %arg1: i32) -> (i32, i32) {
    %c0_i32 = arith.constant 0 : i32
    %c0_i32_0 = arith.constant 0 : i32
    return %c0_i32, %arg1 : i32, i32
  }
  func.func @transform_3(%arg0: i32, %arg1: i32) -> (i32, i32) {
    %c0_i32 = arith.constant 0 : i32
    %c0_i32_0 = arith.constant 0 : i32
    return %arg0, %c0_i32 : i32, i32
  }
}

</mosaic_0001>

<llo_original>
// kernel: generator_forward.1
$region0: #{generator_forward.1}
  #allocation0 [shape = 'u32[]', space=smem, size = 0x4, offset = 0x4, fixed_abs, tag = 'smem constant byte address 0x4 - core index']
  #allocation1 [shape = 'u32[144,128]{1,0:T(1,128)}', space=vmem, size = 0x12000, scoped, tag = 'internal scratch']
  #allocation2 [shape = 'f32[16,128]{1,0:T(8,128)}', space=vmem, size = 0x2000, scoped, tag = 'scratch operand']
  #allocation3 [shape = 'f32[16,128]{1,0:T(8,128)}', space=vmem, size = 0x2000, scoped, tag = 'scratch operand']
  %s0 = inlined_call_operand.hbm [shape: f32[16,32], index: 0, kind: input, shape index: {}]
  %s1 = inlined_call_operand.hbm [shape: f32[32,128], index: 1, kind: input, shape index: {}]
  %s2 = inlined_call_operand.vmem [shape: f32[1,128], index: 2, kind: input, shape index: {}]
  %s3 = inlined_call_operand.hbm [shape: f32[16,128], index: 3, kind: output, shape index: {}]
  %s4 = sld [smem:[#allocation0]]
  $region38: #{generator_forward.1} parent=0
    _
  %s6 = ssub.s32 1, %s4
  %s7 = scalar_select 0, %s6, %s4
  $region1: #{generator_forward.1} parent=0
    #allocation4 [shape = 'u8[8192]{0}', space=vmem, size = 0x2000, scoped, tag = 'input window, operand 0, single buffered']
    #allocation5 [shape = 's32[1]{0}', space=sflag, size = 0x4, scoped, tag = 'scoped memory for generator_forward.1']
    #allocation6 [shape = 's32[1]{0}', space=sflag, size = 0x4, scoped, tag = 'scoped memory for generator_forward.1']
    #allocation7 [shape = 'u8[16384]{0}', space=vmem, size = 0x4000, scoped, tag = 'input window, operand 1, single buffered']
    #allocation8 [shape = 's32[1]{0}', space=sflag, size = 0x4, scoped, tag = 'scoped memory for generator_forward.1']
    #allocation9 [shape = 'u8[8192]{0}', space=vmem, size = 0x2000, scoped, tag = 'output window, operand 0, single buffered']
    %8 = vsyncpa [#allocation5], 0
    %9 = vsyncpa [#allocation8], 0
    %10 = vsyncpa [#allocation6], 0
    // Predicated region
    $region2: #{generator_forward.1} parent=1 // pred_check
      _
    $region3: #{generator_forward.1} parent=1 // pred_check_branch
      %12 = sbr.rel (0) target = $region5
    $region4: #{generator_forward.1} parent=1 // pred_region
      %s14 = ssub.s32 256, 256
      %15 = vsyncadd [#allocation5], %s14
      %s16 = sshll.u32 [#allocation4], 4
      %s17 = int_to_ptr.vmem [resolvable:$true] %s16
      %22 = dma.hbm_to_vmem [thread:$0]  %s0, 256, %s17, [#allocation5], 128, 128, 8
    $region5: #{generator_forward.1} parent=1 // pred_fallthru
      _
    // Predicated region
    $region6: #{generator_forward.1} parent=1 // pred_check
      _
    $region7: #{generator_forward.1} parent=1 // pred_check_branch
      %24 = sbr.rel (0) target = $region9
    $region8: #{generator_forward.1} parent=1 // pred_region
      %s26 = ssub.s32 512, 512
      %27 = vsyncadd [#allocation8], %s26
      %s28 = sshll.u32 [#allocation7], 4
      %s29 = int_to_ptr.vmem [resolvable:$true] %s28
      %34 = dma.hbm_to_vmem [thread:$0]  %s1, 512, %s29, [#allocation8], 128, 128, 8
    $region9: #{generator_forward.1} parent=1 // pred_fallthru
      _
    // Predicated region
    $region10: #{generator_forward.1} parent=1 // pred_check
      _
    $region11: #{generator_forward.1} parent=1 // pred_check_branch
      %36 = sbr.rel (0) target = $region13
    $region12: #{generator_forward.1} parent=1 // pred_region
      _
    $region13: #{generator_forward.1} parent=1 // pred_fallthru
      _
    // Predicated region
    $region14: #{generator_forward.1} parent=1 // pred_check
      _
    $region15: #{generator_forward.1} parent=1 // pred_check_branch
      %38 = sbr.rel (0) target = $region17
    $region16: #{generator_forward.1} parent=1 // pred_region
      %39 = dma.done [#allocation5], 256
    $region17: #{generator_forward.1} parent=1 // pred_fallthru
      _
    // Predicated region
    $region18: #{generator_forward.1} parent=1 // pred_check
      _
    $region19: #{generator_forward.1} parent=1 // pred_check_branch
      %41 = sbr.rel (0) target = $region21
    $region20: #{generator_forward.1} parent=1 // pred_region
      %42 = dma.done [#allocation8], 512
    $region21: #{generator_forward.1} parent=1 // pred_fallthru
      _
    %p43 = scmp.eq.s32.totalorder 0, 0
    // Predicated region
    $region22: #{generator_forward.1} parent=1 // pred_check
      %p44 = pneg %p43
    $region23: #{generator_forward.1} parent=1 // pred_check_branch
      %46 = sbr.rel (%p44) target = $region25
    $region24: #{generator_forward.1} parent=1 // pred_region
      %47 = vst [vmem:[#allocation2] sm:$0xff] -inf
      %48 = vst [vmem:[#allocation2 + $0x8] sm:$0xff] -inf
      %49 = vst [vmem:[#allocation3] sm:$0xff] 0.0
      %50 = vst [vmem:[#allocation3 + $0x8] sm:$0xff] 0.0
    $region25: #{generator_forward.1} parent=1 // pred_fallthru
      _
    %v51 = vld [vmem:[#allocation4] sm:$0xff]
    %v52 = vld [vmem:[#allocation4 + $0x8] sm:$0xff]
    %v53 = vld [vmem:[#allocation7] sm:$0xff]
    %v54 = vld [vmem:[#allocation7 + $0x8] sm:$0xff]
    %v55 = vld [vmem:[#allocation7 + $0x10] sm:$0xff]
    %v56 = vld [vmem:[#allocation7 + $0x18] sm:$0xff]
    %v57 = vld [vmem:[%s2] sm:$0x1]
    %v59 = vlaneseq
    %v60 = vshrl.u32 %v59, 7
    %v61 = vsub.s32 0, %v60
    %v62 = vrot.slane %v57, %v61
    %vm64 = vcmask 261120
    %v66 = vsel %vm64, %v51, 0
    %v69 = vsel %vm64, %v52, 0
    %71 = vmatprep.subr.mxu0 0.0
    %72 = vmatpush1.msra.mxu0 %v53
    %73 = vmatprep.subr.mxu0 0.0
    %74 = vmatpush1.msra.mxu0 %v54
    %75 = vmatprep.subr.mxu0 0.0
    %76 = vmatpush1.msra.mxu0 %v55
    %77 = vmatprep.subr.mxu0 0.0
    %78 = vmatpush1.msra.mxu0 %v56
    %79 = vmatprep.subr.mxu0 0.0
    %80 = vmatpush1.msra.mxu0 0.0
    %81 = vmatprep.subr.mxu0 0.0
    %82 = vmatpush1.msra.mxu0 0.0
    %83 = vmatprep.subr.mxu0 0.0
    %84 = vmatpush1.msra.mxu0 0.0
    %85 = vmatprep.subr.mxu0 0.0
    %86 = vmatpush1.msra.mxu0 0.0
    %87 = vmatprep.subr.mxu0 0.0
    %88 = vmatpush1.msra.mxu0 0.0
    %89 = vmatprep.subr.mxu0 0.0
    %90 = vmatpush1.msra.mxu0 0.0
    %91 = vmatprep.subr.mxu0 0.0
    %92 = vmatpush1.msra.mxu0 0.0
    %93 = vmatprep.subr.mxu0 0.0
    %94 = vmatpush1.msra.mxu0 0.0
    %95 = vmatprep.subr.mxu0 0.0
    %96 = vmatpush1.msra.mxu0 0.0
    %97 = vmatprep.subr.mxu0 0.0
    %98 = vmatpush1.msra.mxu0 0.0
    %99 = vmatprep.subr.mxu0 0.0
    %100 = vmatpush1.msra.mxu0 0.0
    %101 = vmatprep.subr.mxu0 0.0
    %102 = vmatpush1.msra.mxu0 0.0
    %103 = vmatprep.subr.mxu0 0.0
    %104 = vmatpush1.msra.mxu0 0.0
    %105 = vmatprep.subr.mxu0 0.0
    %106 = vmatpush1.msra.mxu0 0.0
    %107 = vmatprep.subr.mxu0 0.0
    %108 = vmatpush1.msra.mxu0 0.0
    %109 = vmatprep.subr.mxu0 0.0
    %110 = vmatpush1.msra.mxu0 0.0
    %111 = vmatprep.subr.mxu0 0.0
    %112 = vmatpush1.msra.mxu0 0.0
    %113 = vmatprep.subr.mxu0 0.0
    %114 = vmatpush1.msra.mxu0 0.0
    %115 = vmatprep.subr.mxu0 0.0
    %116 = vmatpush1.msra.mxu0 0.0
    %117 = vmatprep.subr.mxu0 0.0
    %118 = vmatpush1.msra.mxu0 0.0
    %119 = vmatprep.subr.mxu0 0.0
    %120 = vmatpush1.msra.mxu0 0.0
    %121 = vmatprep.subr.mxu0 0.0
    %122 = vmatpush1.msra.mxu0 0.0
    %123 = vmatprep.subr.mxu0 0.0
    %124 = vmatpush1.msra.mxu0 0.0
    %125 = vmatprep.subr.mxu0 0.0
    %126 = vmatpush1.msra.mxu0 0.0
    %127 = vmatprep.subr.mxu0 0.0
    %128 = vmatpush1.msra.mxu0 0.0
    %129 = vmatprep.subr.mxu0 0.0
    %130 = vmatpush1.msra.mxu0 0.0
    %131 = vmatprep.subr.mxu0 0.0
    %132 = vmatpush1.msra.mxu0 0.0
    %133 = vmatprep.subr.mxu0 0.0
    %134 = vmatpush1.msra.mxu0 0.0
    %135 = vmatprep.mubr.f32.mxu0 0.0
    %136 = vmatmul.mubr.f32.gmra.mrb[0].mxu0 %v66
    %v137 = vpop.f32.mrb[0].mxu0
    %v138 = vadd.f32 %v62, %v137
    %v139 = vpop.f32.mrb[0].mxu0
    %140 = vmatprep.mubr.f32.mxu0 0.0
    %141 = vmatmul.mubr.f32.gmra.mrb[0].mxu0 %v69
    %v142 = vpop.f32.mrb[0].mxu0
    %v143 = vadd.f32 %v62, %v142
    %v144 = vpop.f32.mrb[0].mxu0
    %145 = vdwg.mxu0
    %s146 = smul.u32 0, 128
    %s147 = sshra.s32 %s146, 7
    %s148 = sand.u32 %s146, 127
    %s149 = scalar_lea.vmem [#allocation9], %s147
    %150 = vst [vmem:[%s149] sm:$0xff] %v138
    %151 = vst [vmem:[%s149 + $0x8] sm:$0xff] %v143
    %v152 = vld [vmem:[#allocation2] sm:$0xff]
    %v153 = vld [vmem:[#allocation2 + $0x8] sm:$0xff]
    %v154 = vmax.f32 %v152, %v138
    %v155 = vmax.f32 %v153, %v143
    %v156 = vld [vmem:[#allocation3] sm:$0xff]
    %v157 = vld [vmem:[#allocation3 + $0x8] sm:$0xff]
    %v158 = vsub.f32 %v152, %v154
    %v159 = vsub.f32 %v153, %v155
    %v160 = vmul.f32 %v158, 1.442695
    %v161 = vpow.pop %v160
    %v162 = vmul.f32 %v159, 1.442695
    %v163 = vpow.pop %v162
    %v164 = vmul.f32 %v156, %v161
    %v165 = vmul.f32 %v157, %v163
    %v166 = vsub.f32 %v138, %v154
    %v167 = vsub.f32 %v143, %v155
    %v168 = vmul.f32 %v166, 1.442695
    %v169 = vpow.pop %v168
    %v170 = vmul.f32 %v167, 1.442695
    %v171 = vpow.pop %v170
    %v172 = vadd.f32 %v164, %v169
    %v173 = vadd.f32 %v165, %v171
    %174 = vst [vmem:[#allocation2] sm:$0xff] %v154
    %175 = vst [vmem:[#allocation2 + $0x8] sm:$0xff] %v155
    %176 = vst [vmem:[#allocation3] sm:$0xff] %v172
    %177 = vst [vmem:[#allocation3 + $0x8] sm:$0xff] %v173
    // Predicated region
    $region26: #{generator_forward.1} parent=1 // pred_check
      %p178 = pneg %p43
    $region27: #{generator_forward.1} parent=1 // pred_check_branch
      %180 = sbr.rel (%p178) target = $region29
    $region28: #{generator_forward.1} parent=1 // pred_region
      %v181 = vld [vmem:[#allocation2] sm:$0xff]
      %v182 = vld [vmem:[#allocation2 + $0x8] sm:$0xff]
      %183 = vmax.xlane.f32.xlu0 %v181
      %v184 = vpop.xlane.xlu0 %183
      %185 = vmax.xlane.f32.xlu0 %v182
      %v186 = vpop.xlane.xlu0 %185
      %v187 = vld [vmem:[#allocation3] sm:$0xff]
      %v188 = vld [vmem:[#allocation3 + $0x8] sm:$0xff]
      %v189 = vsub.f32 %v181, %v184
      %v190 = vsub.f32 %v182, %v186
      %v191 = vmul.f32 %v189, 1.442695
      %v192 = vpow.pop %v191
      %v193 = vmul.f32 %v190, 1.442695
      %v194 = vpow.pop %v193
      %v195 = vmul.f32 %v187, %v192
      %v196 = vmul.f32 %v188, %v194
      %197 = vadd.xlane.f32.xlu0 %v195
      %v198 = vpop.xlane.xlu0 %197
      %199 = vadd.xlane.f32.xlu0 %v196
      %v200 = vpop.xlane.xlu0 %199
      %v201 = vlog2.pop %v198
      %v202 = vmul.f32 %v201, 0.6931472
      %v203 = vlog2.pop %v200
      %v204 = vmul.f32 %v203, 0.6931472
      %v205 = vadd.f32 %v184, %v202
      %v206 = vadd.f32 %v186, %v204
      %v207 = vld [vmem:[#allocation9] sm:$0xff]
      %v208 = vld [vmem:[#allocation9 + $0x8] sm:$0xff]
      %v209 = vsub.f32 %v207, %v205
      %v210 = vsub.f32 %v208, %v206
      %211 = vst [vmem:[#allocation9] sm:$0xff] %v209
      %212 = vst [vmem:[#allocation9 + $0x8] sm:$0xff] %v210
    $region29: #{generator_forward.1} parent=1 // pred_fallthru
      _
    // Predicated region
    $region30: #{generator_forward.1} parent=1 // pred_check
      _
    $region31: #{generator_forward.1} parent=1 // pred_check_branch
      %214 = sbr.rel (0) target = $region33
    $region32: #{generator_forward.1} parent=1 // pred_region
      %s216 = ssub.s32 256, 256
      %217 = vsyncadd [#allocation6], %s216
      %s218 = sshll.u32 [#allocation9], 4
      %s219 = int_to_ptr.vmem [resolvable:$true] %s218
      %224 = dma.vmem_to_hbm [thread:$0]  %s219, 256, %s3, [#allocation6], 128, 128, 8
    $region33: #{generator_forward.1} parent=1 // pred_fallthru
      _
    // Predicated region
    $region34: #{generator_forward.1} parent=1 // pred_check
      _
    $region35: #{generator_forward.1} parent=1 // pred_check_branch
      %226 = sbr.rel (0) target = $region37
    $region36: #{generator_forward.1} parent=1 // pred_region
      %227 = dma.done [#allocation6], 256
    $region37: #{generator_forward.1} parent=1 // pred_fallthru
      _
    %228 = vsyncpa [#allocation5], 1
    %229 = vsyncpa [#allocation8], 1
    %230 = vsyncpa [#allocation6], 1

</llo_original>
